<compile_context>
chip_gen: v7x
topology: tpu7x:2x2x1
jax: 0.10.0
libtpu: 0.0.40
codegen_flags: <defaults>
</compile_context>

<pallas_src>
import jax
import jax.numpy as jnp
import numpy as np
from jax.experimental import pallas as pl
from jax.experimental.pallas import tpu as pltpu


def conv1x1_sigmoid_kernel(w_ref, b_ref, x_ref, o_ref):
    # w_ref: SMEM (Cout*Cin,) f32, row-major (o, c)   b_ref: SMEM (Cout,) f32
    # x_ref: VMEM (Cin, rows_tile, 128) f32           o_ref: VMEM (Cout, rows_tile, 128) f32
    cin = x_ref.shape[0]
    cout = o_ref.shape[0]

    # Load each input-channel slab once (dense (rows_tile, 128) vreg tiles);
    # reuse across all output channels.
    xr = [x_ref[c] for c in range(cin)]

    for o in range(cout):                                  # fully unrolled (Cout=5, Cin=3)
        acc = xr[0] * w_ref[o * cin + 0] + b_ref[o]        # VPU MAC with SMEM scalar weights
        for c in range(1, cin):
            acc = acc + xr[c] * w_ref[o * cin + c]
        # sigmoid(x) = 0.5 * tanh(0.5 * x) + 0.5  -> one EUP op, overflow-safe.
        sig = 0.5 * jnp.tanh(0.5 * acc) + 0.5
        o_ref[o] = sig.astype(o_ref.dtype)                 # dense (rows_tile, 128) store


def resnet_forward(x, w, b, *, max_rows_tile=1024):
    """x: (N, Cin, H, W) f32 NCHW; w: (Cout, Cin); b: (Cout,) -> (N, Cout, H, W).

    max_rows_tile=1024 -> 128K lanes/channel/step (~4 MiB dense per step, ~8 MiB
    double-buffered): good for v5e/v6e default scoped VMEM.  On v7x, 2048-3072 can
    amortize per-step overhead better against the 3.2 TB/s HBM.
    """
    N, Cin, H, W = x.shape
    Cout = w.shape[0]
    HW = H * W
    LANE = 128

    # Spatial axis as (rows, 128) lane-dense slabs.
    rows = -(-HW // LANE)                                  # ceil(HW / 128)
    if rows <= max_rows_tile:
        n_tiles = 1
        rows_tile = rows                                   # full-dim block (always legal)
    else:
        n_tiles = -(-rows // max_rows_tile)
        rows_per_tile = -(-rows // n_tiles)
        rows_tile = -(-rows_per_tile // 8) * 8             # multiple of 8 sublanes
    rows_pad = n_tiles * rows_tile
    HW_pad = rows_pad * LANE

    # Free views only; pad the ragged tail (no-op when HW is already aligned).
    x3 = x.reshape(N, Cin, HW)
    if HW_pad != HW:
        x3 = jnp.pad(x3, ((0, 0), (0, 0), (0, HW_pad - HW)))
    x4 = x3.reshape(N, Cin, rows_pad, LANE)

    w_flat = w.reshape(-1).astype(jnp.float32)             # (Cout*Cin,) scalars for SMEM
    b_flat = b.astype(jnp.float32)

    out4 = pl.pallas_call(
        conv1x1_sigmoid_kernel,
        out_shape=jax.ShapeDtypeStruct((N, Cout, rows_pad, LANE), x.dtype),
        grid=(N, n_tiles),
        in_specs=[
            pl.BlockSpec(memory_space=pltpu.MemorySpace.SMEM),          # w: 15 f32 scalars
            pl.BlockSpec(memory_space=pltpu.MemorySpace.SMEM),          # b: 5 f32 scalars
            pl.BlockSpec((pl.Squeezed(), Cin, rows_tile, LANE),         # dense input slab
                         lambda n, s: (n, 0, s, 0)),
        ],
        out_specs=pl.BlockSpec((pl.Squeezed(), Cout, rows_tile, LANE),  # dense output slab
                               lambda n, s: (n, 0, s, 0)),
        compiler_params=pltpu.CompilerParams(
            # Both axes independent -> v7x megacore can shard across its 2 TCs.
            dimension_semantics=("parallel", "parallel"),
        ),
    )(w_flat, b_flat, x4)

    out3 = out4.reshape(N, Cout, HW_pad)
    if HW_pad != HW:
        out3 = out3[:, :, :HW]
    return out3.reshape(N, Cout, H, W)


def init_params(key):
    # Deterministic init mimicking PyTorch Conv2d(3, 5, kernel_size=1) defaults:
    # kaiming_uniform(a=sqrt(5)) => U(-1/sqrt(fan_in), 1/sqrt(fan_in)), fan_in = 3*1*1.
    cin, cout = 3, 5
    kw, kb = jax.random.split(key)
    bound = 1.0 / np.sqrt(cin)
    w = jax.random.uniform(kw, (cout, cin), jnp.float32, minval=-bound, maxval=bound)
    b = jax.random.uniform(kb, (cout,), jnp.float32, minval=-bound, maxval=bound)
    return w, b


if __name__ == "__main__":
    key = jax.random.PRNGKey(0)
    kx, kp = jax.random.split(key)

    # Small NCHW input consistent with Conv2d(3, 5, kernel_size=1).
    x = jax.random.normal(kx, (2, 3, 16, 16), dtype=jnp.float32)
    w, b = init_params(kp)

    out = jax.block_until_ready(resnet_forward(x, w, b))

    # Pure-JAX reference: 1x1 conv == channel matmul, then sigmoid.
    ref = jax.nn.sigmoid(jnp.einsum("oc,nchw->nohw", w, x) + b[None, :, None, None])
    np.testing.assert_allclose(np.asarray(out), np.asarray(ref), rtol=1e-5, atol=1e-5)
    assert out.shape == (2, 5, 16, 16)

    # TODO(synk): torchvision pretrained resnet50 weights are irrelevant here
    # (children[:-10] is empty); the fresh Conv2d(3,5,1) uses PyTorch-default-style init.

    print("KERNEL_OK")
</pallas_src>

<mosaic_0001>
module attributes {stable_mosaic.version = 11 : i64} {
  func.func @conv1x1_sigmoid_kernel(%arg0: i32, %arg1: i32, %arg2: memref<15xf32, #tpu.memory_space<smem>>, %arg3: memref<5xf32, #tpu.memory_space<smem>>, %arg4: memref<1x3x2x128xf32, #tpu.memory_space<vmem>>, %arg5: memref<1x5x2x128xf32, #tpu.memory_space<vmem>>) attributes {dimension_semantics = [#tpu.dimension_semantics<parallel>, #tpu.dimension_semantics<parallel>], iteration_bounds = array<i64: 2, 1>, scalar_prefetch = 0 : i64, scratch_operands = 0 : i64, tpu.core_type = #tpu.core_type<tc>, window_params = [{transform_indices = @transform_0, window_bounds = array<i64: 15>}, {transform_indices = @transform_1, window_bounds = array<i64: 5>}, {transform_indices = @transform_2, window_bounds = array<i64: 1, 3, 2, 128>}, {transform_indices = @transform_3, window_bounds = array<i64: 1, 5, 2, 128>}]} {
    %c0 = arith.constant 0 : index
    %c0_0 = arith.constant 0 : index
    %c0_1 = arith.constant 0 : index
    %c0_2 = arith.constant 0 : index
    %0 = vector.load %arg4[%c0, %c0_0, %c0_1, %c0_2] : memref<1x3x2x128xf32, #tpu.memory_space<vmem>>, vector<1x1x2x128xf32>
    %1 = vector.shape_cast %0 : vector<1x1x2x128xf32> to vector<2x128xf32>
    %c0_3 = arith.constant 0 : index
    %c1 = arith.constant 1 : index
    %c0_4 = arith.constant 0 : index
    %c0_5 = arith.constant 0 : index
    %2 = vector.load %arg4[%c0_3, %c1, %c0_4, %c0_5] : memref<1x3x2x128xf32, #tpu.memory_space<vmem>>, vector<1x1x2x128xf32>
    %3 = vector.shape_cast %2 : vector<1x1x2x128xf32> to vector<2x128xf32>
    %c0_6 = arith.constant 0 : index
    %c2 = arith.constant 2 : index
    %c0_7 = arith.constant 0 : index
    %c0_8 = arith.constant 0 : index
    %4 = vector.load %arg4[%c0_6, %c2, %c0_7, %c0_8] : memref<1x3x2x128xf32, #tpu.memory_space<vmem>>, vector<1x1x2x128xf32>
    %5 = vector.shape_cast %4 : vector<1x1x2x128xf32> to vector<2x128xf32>
    %c0_9 = arith.constant 0 : index
    %6 = memref.load %arg2[%c0_9] : memref<15xf32, #tpu.memory_space<smem>>
    %7 = vector.broadcast %6 : f32 to vector<2x128xf32>
    %8 = arith.mulf %1, %7 : vector<2x128xf32>
    %c0_10 = arith.constant 0 : index
    %9 = memref.load %arg3[%c0_10] : memref<5xf32, #tpu.memory_space<smem>>
    %10 = vector.broadcast %9 : f32 to vector<2x128xf32>
    %11 = arith.addf %8, %10 : vector<2x128xf32>
    %c1_11 = arith.constant 1 : index
    %12 = memref.load %arg2[%c1_11] : memref<15xf32, #tpu.memory_space<smem>>
    %13 = vector.broadcast %12 : f32 to vector<2x128xf32>
    %14 = arith.mulf %3, %13 : vector<2x128xf32>
    %15 = arith.addf %11, %14 : vector<2x128xf32>
    %c2_12 = arith.constant 2 : index
    %16 = memref.load %arg2[%c2_12] : memref<15xf32, #tpu.memory_space<smem>>
    %17 = vector.broadcast %16 : f32 to vector<2x128xf32>
    %18 = arith.mulf %5, %17 : vector<2x128xf32>
    %19 = arith.addf %15, %18 : vector<2x128xf32>
    %cst = arith.constant 5.000000e-01 : f32
    %20 = vector.broadcast %cst : f32 to vector<2x128xf32>
    %21 = arith.mulf %20, %19 : vector<2x128xf32>
    %22 = math.tanh %21 : vector<2x128xf32>
    %cst_13 = arith.constant 5.000000e-01 : f32
    %23 = vector.broadcast %cst_13 : f32 to vector<2x128xf32>
    %24 = arith.mulf %23, %22 : vector<2x128xf32>
    %cst_14 = arith.constant 5.000000e-01 : f32
    %25 = vector.broadcast %cst_14 : f32 to vector<2x128xf32>
    %26 = arith.addf %24, %25 : vector<2x128xf32>
    %c0_15 = arith.constant 0 : index
    %c0_16 = arith.constant 0 : index
    %c0_17 = arith.constant 0 : index
    %c0_18 = arith.constant 0 : index
    %27 = vector.load %arg5[%c0_15, %c0_16, %c0_17, %c0_18] : memref<1x5x2x128xf32, #tpu.memory_space<vmem>>, vector<1x1x2x128xf32>
    %28 = vector.shape_cast %27 : vector<1x1x2x128xf32> to vector<2x128xf32>
    %29 = vector.shape_cast %26 : vector<2x128xf32> to vector<1x1x2x128xf32>
    tpu.vector_store %arg5[%c0_15, %c0_16, %c0_17, %c0_18], %29 {strides = array<i32>} : memref<1x5x2x128xf32, #tpu.memory_space<vmem>>, vector<1x1x2x128xf32>,
    %c3 = arith.constant 3 : index
    %30 = memref.load %arg2[%c3] : memref<15xf32, #tpu.memory_space<smem>>
    %31 = vector.broadcast %30 : f32 to vector<2x128xf32>
    %32 = arith.mulf %1, %31 : vector<2x128xf32>
    %c1_19 = arith.constant 1 : index
    %33 = memref.load %arg3[%c1_19] : memref<5xf32, #tpu.memory_space<smem>>
    %34 = vector.broadcast %33 : f32 to vector<2x128xf32>
    %35 = arith.addf %32, %34 : vector<2x128xf32>
    %c4 = arith.constant 4 : index
    %36 = memref.load %arg2[%c4] : memref<15xf32, #tpu.memory_space<smem>>
    %37 = vector.broadcast %36 : f32 to vector<2x128xf32>
    %38 = arith.mulf %3, %37 : vector<2x128xf32>
    %39 = arith.addf %35, %38 : vector<2x128xf32>
    %c5 = arith.constant 5 : index
    %40 = memref.load %arg2[%c5] : memref<15xf32, #tpu.memory_space<smem>>
    %41 = vector.broadcast %40 : f32 to vector<2x128xf32>
    %42 = arith.mulf %5, %41 : vector<2x128xf32>
    %43 = arith.addf %39, %42 : vector<2x128xf32>
    %cst_20 = arith.constant 5.000000e-01 : f32
    %44 = vector.broadcast %cst_20 : f32 to vector<2x128xf32>
    %45 = arith.mulf %44, %43 : vector<2x128xf32>
    %46 = math.tanh %45 : vector<2x128xf32>
    %cst_21 = arith.constant 5.000000e-01 : f32
    %47 = vector.broadcast %cst_21 : f32 to vector<2x128xf32>
    %48 = arith.mulf %47, %46 : vector<2x128xf32>
    %cst_22 = arith.constant 5.000000e-01 : f32
    %49 = vector.broadcast %cst_22 : f32 to vector<2x128xf32>
    %50 = arith.addf %48, %49 : vector<2x128xf32>
    %c0_23 = arith.constant 0 : index
    %c1_24 = arith.constant 1 : index
    %c0_25 = arith.constant 0 : index
    %c0_26 = arith.constant 0 : index
    %51 = vector.load %arg5[%c0_23, %c1_24, %c0_25, %c0_26] : memref<1x5x2x128xf32, #tpu.memory_space<vmem>>, vector<1x1x2x128xf32>
    %52 = vector.shape_cast %51 : vector<1x1x2x128xf32> to vector<2x128xf32>
    %53 = vector.shape_cast %50 : vector<2x128xf32> to vector<1x1x2x128xf32>
    tpu.vector_store %arg5[%c0_23, %c1_24, %c0_25, %c0_26], %53 {strides = array<i32>} : memref<1x5x2x128xf32, #tpu.memory_space<vmem>>, vector<1x1x2x128xf32>,
    %c6 = arith.constant 6 : index
    %54 = memref.load %arg2[%c6] : memref<15xf32, #tpu.memory_space<smem>>
    %55 = vector.broadcast %54 : f32 to vector<2x128xf32>
    %56 = arith.mulf %1, %55 : vector<2x128xf32>
    %c2_27 = arith.constant 2 : index
    %57 = memref.load %arg3[%c2_27] : memref<5xf32, #tpu.memory_space<smem>>
    %58 = vector.broadcast %57 : f32 to vector<2x128xf32>
    %59 = arith.addf %56, %58 : vector<2x128xf32>
    %c7 = arith.constant 7 : index
    %60 = memref.load %arg2[%c7] : memref<15xf32, #tpu.memory_space<smem>>
    %61 = vector.broadcast %60 : f32 to vector<2x128xf32>
    %62 = arith.mulf %3, %61 : vector<2x128xf32>
    %63 = arith.addf %59, %62 : vector<2x128xf32>
    %c8 = arith.constant 8 : index
    %64 = memref.load %arg2[%c8] : memref<15xf32, #tpu.memory_space<smem>>
    %65 = vector.broadcast %64 : f32 to vector<2x128xf32>
    %66 = arith.mulf %5, %65 : vector<2x128xf32>
    %67 = arith.addf %63, %66 : vector<2x128xf32>
    %cst_28 = arith.constant 5.000000e-01 : f32
    %68 = vector.broadcast %cst_28 : f32 to vector<2x128xf32>
    %69 = arith.mulf %68, %67 : vector<2x128xf32>
    %70 = math.tanh %69 : vector<2x128xf32>
    %cst_29 = arith.constant 5.000000e-01 : f32
    %71 = vector.broadcast %cst_29 : f32 to vector<2x128xf32>
    %72 = arith.mulf %71, %70 : vector<2x128xf32>
    %cst_30 = arith.constant 5.000000e-01 : f32
    %73 = vector.broadcast %cst_30 : f32 to vector<2x128xf32>
    %74 = arith.addf %72, %73 : vector<2x128xf32>
    %c0_31 = arith.constant 0 : index
    %c2_32 = arith.constant 2 : index
    %c0_33 = arith.constant 0 : index
    %c0_34 = arith.constant 0 : index
    %75 = vector.load %arg5[%c0_31, %c2_32, %c0_33, %c0_34] : memref<1x5x2x128xf32, #tpu.memory_space<vmem>>, vector<1x1x2x128xf32>
    %76 = vector.shape_cast %75 : vector<1x1x2x128xf32> to vector<2x128xf32>
    %77 = vector.shape_cast %74 : vector<2x128xf32> to vector<1x1x2x128xf32>
    tpu.vector_store %arg5[%c0_31, %c2_32, %c0_33, %c0_34], %77 {strides = array<i32>} : memref<1x5x2x128xf32, #tpu.memory_space<vmem>>, vector<1x1x2x128xf32>,
    %c9 = arith.constant 9 : index
    %78 = memref.load %arg2[%c9] : memref<15xf32, #tpu.memory_space<smem>>
    %79 = vector.broadcast %78 : f32 to vector<2x128xf32>
    %80 = arith.mulf %1, %79 : vector<2x128xf32>
    %c3_35 = arith.constant 3 : index
    %81 = memref.load %arg3[%c3_35] : memref<5xf32, #tpu.memory_space<smem>>
    %82 = vector.broadcast %81 : f32 to vector<2x128xf32>
    %83 = arith.addf %80, %82 : vector<2x128xf32>
    %c10 = arith.constant 10 : index
    %84 = memref.load %arg2[%c10] : memref<15xf32, #tpu.memory_space<smem>>
    %85 = vector.broadcast %84 : f32 to vector<2x128xf32>
    %86 = arith.mulf %3, %85 : vector<2x128xf32>
    %87 = arith.addf %83, %86 : vector<2x128xf32>
    %c11 = arith.constant 11 : index
    %88 = memref.load %arg2[%c11] : memref<15xf32, #tpu.memory_space<smem>>
    %89 = vector.broadcast %88 : f32 to vector<2x128xf32>
    %90 = arith.mulf %5, %89 : vector<2x128xf32>
    %91 = arith.addf %87, %90 : vector<2x128xf32>
    %cst_36 = arith.constant 5.000000e-01 : f32
    %92 = vector.broadcast %cst_36 : f32 to vector<2x128xf32>
    %93 = arith.mulf %92, %91 : vector<2x128xf32>
    %94 = math.tanh %93 : vector<2x128xf32>
    %cst_37 = arith.constant 5.000000e-01 : f32
    %95 = vector.broadcast %cst_37 : f32 to vector<2x128xf32>
    %96 = arith.mulf %95, %94 : vector<2x128xf32>
    %cst_38 = arith.constant 5.000000e-01 : f32
    %97 = vector.broadcast %cst_38 : f32 to vector<2x128xf32>
    %98 = arith.addf %96, %97 : vector<2x128xf32>
    %c0_39 = arith.constant 0 : index
    %c3_40 = arith.constant 3 : index
    %c0_41 = arith.constant 0 : index
    %c0_42 = arith.constant 0 : index
    %99 = vector.load %arg5[%c0_39, %c3_40, %c0_41, %c0_42] : memref<1x5x2x128xf32, #tpu.memory_space<vmem>>, vector<1x1x2x128xf32>
    %100 = vector.shape_cast %99 : vector<1x1x2x128xf32> to vector<2x128xf32>
    %101 = vector.shape_cast %98 : vector<2x128xf32> to vector<1x1x2x128xf32>
    tpu.vector_store %arg5[%c0_39, %c3_40, %c0_41, %c0_42], %101 {strides = array<i32>} : memref<1x5x2x128xf32, #tpu.memory_space<vmem>>, vector<1x1x2x128xf32>,
    %c12 = arith.constant 12 : index
    %102 = memref.load %arg2[%c12] : memref<15xf32, #tpu.memory_space<smem>>
    %103 = vector.broadcast %102 : f32 to vector<2x128xf32>
    %104 = arith.mulf %1, %103 : vector<2x128xf32>
    %c4_43 = arith.constant 4 : index
    %105 = memref.load %arg3[%c4_43] : memref<5xf32, #tpu.memory_space<smem>>
    %106 = vector.broadcast %105 : f32 to vector<2x128xf32>
    %107 = arith.addf %104, %106 : vector<2x128xf32>
    %c13 = arith.constant 13 : index
    %108 = memref.load %arg2[%c13] : memref<15xf32, #tpu.memory_space<smem>>
    %109 = vector.broadcast %108 : f32 to vector<2x128xf32>
    %110 = arith.mulf %3, %109 : vector<2x128xf32>
    %111 = arith.addf %107, %110 : vector<2x128xf32>
    %c14 = arith.constant 14 : index
    %112 = memref.load %arg2[%c14] : memref<15xf32, #tpu.memory_space<smem>>
    %113 = vector.broadcast %112 : f32 to vector<2x128xf32>
    %114 = arith.mulf %5, %113 : vector<2x128xf32>
    %115 = arith.addf %111, %114 : vector<2x128xf32>
    %cst_44 = arith.constant 5.000000e-01 : f32
    %116 = vector.broadcast %cst_44 : f32 to vector<2x128xf32>
    %117 = arith.mulf %116, %115 : vector<2x128xf32>
    %118 = math.tanh %117 : vector<2x128xf32>
    %cst_45 = arith.constant 5.000000e-01 : f32
    %119 = vector.broadcast %cst_45 : f32 to vector<2x128xf32>
    %120 = arith.mulf %119, %118 : vector<2x128xf32>
    %cst_46 = arith.constant 5.000000e-01 : f32
    %121 = vector.broadcast %cst_46 : f32 to vector<2x128xf32>
    %122 = arith.addf %120, %121 : vector<2x128xf32>
    %c0_47 = arith.constant 0 : index
    %c4_48 = arith.constant 4 : index
    %c0_49 = arith.constant 0 : index
    %c0_50 = arith.constant 0 : index
    %123 = vector.load %arg5[%c0_47, %c4_48, %c0_49, %c0_50] : memref<1x5x2x128xf32, #tpu.memory_space<vmem>>, vector<1x1x2x128xf32>
    %124 = vector.shape_cast %123 : vector<1x1x2x128xf32> to vector<2x128xf32>
    %125 = vector.shape_cast %122 : vector<2x128xf32> to vector<1x1x2x128xf32>
    tpu.vector_store %arg5[%c0_47, %c4_48, %c0_49, %c0_50], %125 {strides = array<i32>} : memref<1x5x2x128xf32, #tpu.memory_space<vmem>>, vector<1x1x2x128xf32>,
    return
  }
  func.func @transform_0(%arg0: i32, %arg1: i32) -> i32 {
    %c0_i32 = arith.constant 0 : i32
    %c0_i32_0 = arith.constant 0 : i32
    return %c0_i32 : i32
  }
  func.func @transform_1(%arg0: i32, %arg1: i32) -> i32 {
    %c0_i32 = arith.constant 0 : i32
    %c0_i32_0 = arith.constant 0 : i32
    return %c0_i32 : i32
  }
  func.func @transform_2(%arg0: i32, %arg1: i32) -> (i32, i32, i32, i32) {
    %c0_i32 = arith.constant 0 : i32
    %c0_i32_0 = arith.constant 0 : i32
    %c0_i32_1 = arith.constant 0 : i32
    return %arg0, %c0_i32, %arg1, %c0_i32_0 : i32, i32, i32, i32
  }
  func.func @transform_3(%arg0: i32, %arg1: i32) -> (i32, i32, i32, i32) {
    %c0_i32 = arith.constant 0 : i32
    %c0_i32_0 = arith.constant 0 : i32
    %c0_i32_1 = arith.constant 0 : i32
    return %arg0, %c0_i32, %arg1, %c0_i32_0 : i32, i32, i32, i32
  }
}

</mosaic_0001>

<llo_original>
// kernel: tpu_custom_call.1
$region0: #{tpu_custom_call.1}
  #allocation0 [shape = 'u32[]', space=smem, size = 0x4, offset = 0x4, fixed_abs, tag = 'smem constant byte address 0x4 - core index']
  #allocation1 [shape = 'u32[144,128]{1,0:T(1,128)}', space=vmem, size = 0x12000, scoped, tag = 'internal scratch']
  %s0 = inlined_call_operand.hbm [shape: f32[15], index: 0, kind: input, shape index: {}]
  %s1 = inlined_call_operand.vmem [shape: f32[5], index: 1, kind: input, shape index: {}]
  %s2 = inlined_call_operand.hbm [shape: f32[2,3,2,128], index: 2, kind: input, shape index: {}]
  %s3 = inlined_call_operand.hbm [shape: f32[2,5,2,128], index: 3, kind: output, shape index: {}]
  %s4 = sld [smem:[#allocation0]]
  $region57: #{tpu_custom_call.1} parent=0
    _
  %s6 = ssub.s32 1, %s4
  %s7 = scalar_select 0, %s6, %s4
  $region1: #{tpu_custom_call.1} parent=0
    #allocation2 [shape = 'u8[512]{0}', space=smem, size = 0x200, scoped, tag = 'input window, operand 0, single buffered']
    #allocation3 [shape = 's32[2]{0}', space=sflag, size = 0x8, scoped, tag = 'scoped memory for tpu_custom_call.1']
    #allocation4 [shape = 's32[2]{0}', space=sflag, size = 0x8, scoped, tag = 'scoped memory for tpu_custom_call.1']
    #allocation5 [shape = 's32[2]{0}', space=sflag, size = 0x8, scoped, tag = 'scoped memory for tpu_custom_call.1']
    #allocation6 [shape = 's32[2]{0}', space=sflag, size = 0x8, scoped, tag = 'scoped memory for tpu_custom_call.1']
    #allocation7 [shape = 'u8[512]{0}', space=smem, size = 0x200, scoped, tag = 'input window, operand 1, single buffered']
    #allocation8 [shape = 'u8[6144]{0}', space=vmem, size = 0x1800, scoped, tag = 'input window, operand 2']
    #allocation9 [shape = 'u8[10240]{0}', space=vmem, size = 0x2800, scoped, tag = 'output window, operand 0']
    %8 = vsyncpa [#allocation5], 0
    %9 = vsyncpa [#allocation6], 0
    %10 = vsyncpa [#allocation3], 0
    %s11 = scalar_lea.sflag [#allocation3], 1
    %12 = vsyncpa %s11, 0
    %13 = vsyncpa [#allocation4], 0
    %s14 = scalar_lea.sflag [#allocation4], 1
    %15 = vsyncpa %s14, 0
    loop: start=0, step=1, limit=4
    $region2: #{tpu_custom_call.1} parent=1 // loop_pre_header
      _
    $region3: #{tpu_custom_call.1} parent=1 // loop_header
      %s17 = sphi 0, %s21
      %p18 = scmp.ge.s32.totalorder %s17, 4
      %s24 = sphi 0, %s36
      %s25 = sphi 0, %s32
      %s26 = sphi 0, %s24
      %s27 = sphi 0, %s25
      %s28 = sphi 0, %s26
      %s29 = sphi 0, %s27
      %s37 = sphi 0, %s37
      %s39 = sphi 0, %s37
      %s40 = sphi 0, %s39
      %s54 = sphi 0, %s40
      %s58 = sphi 0, %s58
      %s60 = sphi 0, %s58
      %s61 = sphi 0, %s60
      %s75 = sphi 0, %s61
      %s83 = sphi 0, %s85
      %s86 = sphi 0, %s83
      %s87 = sphi 0, %s86
      %s103 = sphi 0, %s87
      %s111 = sphi 0, %s113
      %s114 = sphi 0, %s111
      %s115 = sphi 0, %s114
      %s131 = sphi 0, %s115
    $region4: #{tpu_custom_call.1} parent=1 // loop_header_branch
      %20 = sbr.rel (%p18) target = $region8
    $region5: #{tpu_custom_call.1} parent=1 // loop_body
      %s22 = ssub.s32 %s17, 1
      %s23 = ssub.s32 %s17, 2
      %s30 = sadd.s32 1, %s25
      %p31 = scmp.ge.s32.totalorder %s30, 1
      %s32 = scalar_select %p31, 0, %s30
      %s33 = sadd.s32 1, %s24
      %s34 = scalar_select %p31, %s33, %s24
      %p35 = scmp.ge.s32.totalorder %s34, 2
      %s36 = scalar_select %p35, 0, %s34
      %s38 = sadd.s32 %s37, 1
      %p41 = scmp.eq.s32.totalorder %s17, 1
      %p42 = scmp.ne.s32.totalorder %s37, %s39
      %p43 = scmp.eq.s32.totalorder %s17, 0
      %p44 = por %p42, %p43
      %p45 = scmp.ne.s32.totalorder %s37, %s39
      %p46 = scmp.eq.s32.totalorder %s22, 1
      %p47 = por %p45, %p46
      %p48 = scmp.ne.s32.totalorder %s39, %s40
      %p49 = scmp.eq.s32.totalorder %s22, 0
      %p50 = por %p48, %p49
      %p51 = scmp.ne.s32.totalorder %s39, %s40
      %p52 = scmp.eq.s32.totalorder %s23, 1
      %p53 = por %p51, %p52
      %p55 = scmp.ne.s32.totalorder %s40, %s54
      %p56 = scmp.eq.s32.totalorder %s23, 0
      %p57 = por %p55, %p56
      %s59 = sadd.s32 %s58, 1
      %p62 = scmp.eq.s32.totalorder %s17, 1
      %p63 = scmp.ne.s32.totalorder %s58, %s60
      %p64 = scmp.eq.s32.totalorder %s17, 0
      %p65 = por %p63, %p64
      %p66 = scmp.ne.s32.totalorder %s58, %s60
      %p67 = scmp.eq.s32.totalorder %s22, 1
      %p68 = por %p66, %p67
      %p69 = scmp.ne.s32.totalorder %s60, %s61
      %p70 = scmp.eq.s32.totalorder %s22, 0
      %p71 = por %p69, %p70
      %p72 = scmp.ne.s32.totalorder %s60, %s61
      %p73 = scmp.eq.s32.totalorder %s23, 1
      %p74 = por %p72, %p73
      %p76 = scmp.ne.s32.totalorder %s61, %s75
      %p77 = scmp.eq.s32.totalorder %s23, 0
      %p78 = por %p76, %p77
      %s79 = ssub.s32 %s24, %s36
      %s80 = ssub.s32 %s25, %s32
      %s81 = sor.u32 %s79, %s80
      %p82 = scmp.eq.s32.totalorder %s81, 0
      %s84 = sadd.s32 %s83, 1
      %s85 = scalar_select %p82, %s83, %s84
      %p88 = pneg %p82
      %p89 = scmp.eq.s32.totalorder %s17, 1
      %p90 = por %p88, %p89
      %p91 = scmp.ne.s32.totalorder %s83, %s86
      %p92 = scmp.eq.s32.totalorder %s17, 0
      %p93 = por %p91, %p92
      %p94 = scmp.ne.s32.totalorder %s83, %s86
      %p95 = scmp.eq.s32.totalorder %s22, 1
      %p96 = por %p94, %p95
      %p97 = scmp.ne.s32.totalorder %s86, %s87
      %p98 = scmp.eq.s32.totalorder %s22, 0
      %p99 = por %p97, %p98
      %p100 = scmp.ne.s32.totalorder %s86, %s87
      %p101 = scmp.eq.s32.totalorder %s23, 1
      %p102 = por %p100, %p101
      %p104 = scmp.ne.s32.totalorder %s87, %s103
      %p105 = scmp.eq.s32.totalorder %s23, 0
      %p106 = por %p104, %p105
      %s107 = ssub.s32 %s24, %s36
      %s108 = ssub.s32 %s25, %s32
      %s109 = sor.u32 %s107, %s108
      %p110 = scmp.eq.s32.totalorder %s109, 0
      %s112 = sadd.s32 %s111, 1
      %s113 = scalar_select %p110, %s111, %s112
      %p116 = pneg %p110
      %p117 = scmp.eq.s32.totalorder %s17, 1
      %p118 = por %p116, %p117
      %p119 = scmp.ne.s32.totalorder %s111, %s114
      %p120 = scmp.eq.s32.totalorder %s17, 0
      %p121 = por %p119, %p120
      %p122 = scmp.ne.s32.totalorder %s111, %s114
      %p123 = scmp.eq.s32.totalorder %s22, 1
      %p124 = por %p122, %p123
      %p125 = scmp.ne.s32.totalorder %s114, %s115
      %p126 = scmp.eq.s32.totalorder %s22, 0
      %p127 = por %p125, %p126
      %p128 = scmp.ne.s32.totalorder %s114, %s115
      %p129 = scmp.eq.s32.totalorder %s23, 1
      %p130 = por %p128, %p129
      %p132 = scmp.ne.s32.totalorder %s115, %s131
      %p133 = scmp.eq.s32.totalorder %s23, 0
      %p134 = por %p132, %p133
      %p135 = scmp.le.s32.totalorder 1, %s17
      %p136 = scmp.lt.s32.totalorder %s17, 3
      %p137 = pnand %p135, %p136
      %p138 = pneg %p137
      // Predicated region
      $region9: #{tpu_custom_call.1} parent=5 // pred_check
        _
      $region10: #{tpu_custom_call.1} parent=5 // pred_check_branch
        %140 = sbr.rel (%p137) target = $region12
      $region11: #{tpu_custom_call.1} parent=5 // pred_region
        %s141 = ssub.s32 %s17, 1
        // Predicated region
        $region13: #{tpu_custom_call.1} parent=11 // pred_check
          %p142 = pneg %p50
        $region14: #{tpu_custom_call.1} parent=11 // pred_check_branch
          %144 = sbr.rel (%p142) target = $region16
        $region15: #{tpu_custom_call.1} parent=11 // pred_region
          %s146 = ssub.s32 16, 16
          %147 = vsyncadd [#allocation5], %s146
          %150 = dma.hbm_to_smem %s0, 16, [#allocation2], [#allocation5]
        $region16: #{tpu_custom_call.1} parent=11 // pred_fallthru
          _
        // Predicated region
        $region17: #{tpu_custom_call.1} parent=11 // pred_check
          %p151 = pneg %p71
        $region18: #{tpu_custom_call.1} parent=11 // pred_check_branch
          %153 = sbr.rel (%p151) target = $region20
        $region19: #{tpu_custom_call.1} parent=11 // pred_region
          %s155 = ssub.s32 16, 16
          %156 = vsyncadd [#allocation6], %s155
          %s158 = sshll.u32 %s1, 4
          %s159 = int_to_ptr.vmem [resolvable:$true] %s158
          %161 = dma.vmem_to_smem %s159, 16, [#allocation7], [#allocation6]
        $region20: #{tpu_custom_call.1} parent=11 // pred_fallthru
          _
      $region12: #{tpu_custom_call.1} parent=5 // pred_fallthru
        _
      %p162 = scmp.lt.s32.totalorder %s17, 2
      // Predicated region
      $region21: #{tpu_custom_call.1} parent=5 // pred_check
        %p163 = pneg %p162
      $region22: #{tpu_custom_call.1} parent=5 // pred_check_branch
        %165 = sbr.rel (%p163) target = $region24
      $region23: #{tpu_custom_call.1} parent=5 // pred_region
        // Predicated region
        $region25: #{tpu_custom_call.1} parent=23 // pred_check
          %p166 = pneg %p93
        $region26: #{tpu_custom_call.1} parent=23 // pred_check_branch
          %168 = sbr.rel (%p166) target = $region28
        $region27: #{tpu_custom_call.1} parent=23 // pred_region
          %s169 = sand.u32 %s83, 1
          %s170 = scalar_lea.sflag [#allocation3], %s169
          %s171 = sand.u32 %s83, 1
          %s172 = smul.addr %s171, 6
          %s173 = scalar_lea.vmem [#allocation8], %s172
          %s175 = ssub.s32 96, 96
          %176 = vsyncadd %s170, %s175
          %s177 = smul.addr %s24, 3
          %s178 = sadd.s32 %s25, %s177
          %s179 = smul.addr %s178, 32
          %s180 = scalar_lea.hbm %s2, %s179
          %s181 = sshll.u32 %s173, 4
          %s182 = int_to_ptr.vmem [resolvable:$true] %s181
          %187 = dma.hbm_to_vmem [thread:$0]  %s180, 96, %s182, %s170, 32, 32, 2
        $region28: #{tpu_custom_call.1} parent=23 // pred_fallthru
          _
      $region24: #{tpu_custom_call.1} parent=5 // pred_fallthru
        _
      %p188 = scmp.le.s32.totalorder 1, %s17
      %p189 = scmp.lt.s32.totalorder %s17, 3
      %p190 = pnand %p188, %p189
      %p191 = pneg %p190
      // Predicated region
      $region29: #{tpu_custom_call.1} parent=5 // pred_check
        _
      $region30: #{tpu_custom_call.1} parent=5 // pred_check_branch
        %193 = sbr.rel (%p190) target = $region32
      $region31: #{tpu_custom_call.1} parent=5 // pred_region
        %s194 = ssub.s32 %s17, 1
        // Predicated region
        $region33: #{tpu_custom_call.1} parent=31 // pred_check
          %p195 = pneg %p50
        $region34: #{tpu_custom_call.1} parent=31 // pred_check_branch
          %197 = sbr.rel (%p195) target = $region36
        $region35: #{tpu_custom_call.1} parent=31 // pred_region
          %198 = dma.done [#allocation5], 16
        $region36: #{tpu_custom_call.1} parent=31 // pred_fallthru
          _
        // Predicated region
        $region37: #{tpu_custom_call.1} parent=31 // pred_check
          %p199 = pneg %p71
        $region38: #{tpu_custom_call.1} parent=31 // pred_check_branch
          %201 = sbr.rel (%p199) target = $region40
        $region39: #{tpu_custom_call.1} parent=31 // pred_region
          %202 = dma.done [#allocation6], 16
        $region40: #{tpu_custom_call.1} parent=31 // pred_fallthru
          _
        %s203 = sand.u32 %s86, 1
        %s204 = scalar_lea.sflag [#allocation3], %s203
        %s205 = sand.u32 %s86, 1
        %s206 = smul.addr %s205, 6
        %s207 = scalar_lea.vmem [#allocation8], %s206
        // Predicated region
        $region41: #{tpu_custom_call.1} parent=31 // pred_check
          %p208 = pneg %p99
        $region42: #{tpu_custom_call.1} parent=31 // pred_check_branch
          %210 = sbr.rel (%p208) target = $region44
        $region43: #{tpu_custom_call.1} parent=31 // pred_region
          %211 = dma.done %s204, 96
        $region44: #{tpu_custom_call.1} parent=31 // pred_fallthru
          _
        %212 = sfence
        %p213 = pneg %p50
        %p214 = pneg %p47
        %p215 = pneg %p71
        %p216 = pneg %p68
        %s217 = sand.u32 %s86, 1
        %s218 = scalar_lea.sflag [#allocation3], %s217
        %s219 = sand.u32 %s86, 1
        %s220 = smul.addr %s219, 6
        %s221 = scalar_lea.vmem [#allocation8], %s220
        %p222 = pneg %p99
        %p223 = pneg %p96
        %p224 = pneg %p127
        %p225 = pneg %p124
        %s226 = sand.u32 %s114, 1
        %s227 = scalar_lea.sflag [#allocation4], %s226
        %s228 = sand.u32 %s114, 1
        %s229 = smul.addr %s228, 10
        %s230 = scalar_lea.vmem [#allocation9], %s229
        %v231 = vld [vmem:[%s207] sm:$0x3]
        %s232 = scalar_lea.vmem %s207, 2 [#allocation8]
        %v233 = vld [vmem:[%s232] sm:$0x3]
        %s234 = scalar_lea.vmem %s207, 4 [#allocation8]
        %v235 = vld [vmem:[%s234] sm:$0x3]
        %s236 = sld [smem:[#allocation2]]
        %v237 = vstv %s236
        %v238 = vmul.f32 %v231, %v237
        %s239 = sld [smem:[#allocation7]]
        %v240 = vstv %s239
        %v241 = vadd.f32 %v238, %v240
        %s242 = sld [smem:[#allocation2 + $0x1]]
        %v243 = vstv %s242
        %v244 = vmul.f32 %v233, %v243
        %v245 = vadd.f32 %v241, %v244
        %s246 = sld [smem:[#allocation2 + $0x2]]
        %v247 = vstv %s246
        %v248 = vmul.f32 %v235, %v247
        %v249 = vadd.f32 %v245, %v248
        %v250 = vmul.f32 %v249, 0.5
        %v251 = vtanh.pop %v250
        %v252 = vmul.f32 %v251, 0.5
        %v253 = vadd.f32 %v252, 0.5
        %254 = vst [vmem:[%s230] sm:$0x3] %v253
        %s255 = sld [smem:[#allocation2 + $0x3]]
        %v256 = vstv %s255
        %v257 = vmul.f32 %v231, %v256
        %s258 = sld [smem:[#allocation7 + $0x1]]
        %v259 = vstv %s258
        %v260 = vadd.f32 %v257, %v259
        %s261 = sld [smem:[#allocation2 + $0x4]]
        %v262 = vstv %s261
        %v263 = vmul.f32 %v233, %v262
        %v264 = vadd.f32 %v260, %v263
        %s265 = sld [smem:[#allocation2 + $0x5]]
        %v266 = vstv %s265
        %v267 = vmul.f32 %v235, %v266
        %v268 = vadd.f32 %v264, %v267
        %v269 = vmul.f32 %v268, 0.5
        %v270 = vtanh.pop %v269
        %v271 = vmul.f32 %v270, 0.5
        %v272 = vadd.f32 %v271, 0.5
        %s273 = scalar_lea.vmem %s230, 2 [#allocation9]
        %274 = vst [vmem:[%s273] sm:$0x3] %v272
        %s275 = sld [smem:[#allocation2 + $0x6]]
        %v276 = vstv %s275
        %v277 = vmul.f32 %v231, %v276
        %s278 = sld [smem:[#allocation7 + $0x2]]
        %v279 = vstv %s278
        %v280 = vadd.f32 %v277, %v279
        %s281 = sld [smem:[#allocation2 + $0x7]]
        %v282 = vstv %s281
        %v283 = vmul.f32 %v233, %v282
        %v284 = vadd.f32 %v280, %v283
        %s285 = sld [smem:[#allocation2 + $0x8]]
        %v286 = vstv %s285
        %v287 = vmul.f32 %v235, %v286
        %v288 = vadd.f32 %v284, %v287
        %v289 = vmul.f32 %v288, 0.5
        %v290 = vtanh.pop %v289
        %v291 = vmul.f32 %v290, 0.5
        %v292 = vadd.f32 %v291, 0.5
        %s293 = scalar_lea.vmem %s230, 4 [#allocation9]
        %294 = vst [vmem:[%s293] sm:$0x3] %v292
        %s295 = sld [smem:[#allocation2 + $0x9]]
        %v296 = vstv %s295
        %v297 = vmul.f32 %v231, %v296
        %s298 = sld [smem:[#allocation7 + $0x3]]
        %v299 = vstv %s298
        %v300 = vadd.f32 %v297, %v299
        %s301 = sld [smem:[#allocation2 + $0xa]]
        %v302 = vstv %s301
        %v303 = vmul.f32 %v233, %v302
        %v304 = vadd.f32 %v300, %v303
        %s305 = sld [smem:[#allocation2 + $0xb]]
        %v306 = vstv %s305
        %v307 = vmul.f32 %v235, %v306
        %v308 = vadd.f32 %v304, %v307
        %v309 = vmul.f32 %v308, 0.5
        %v310 = vtanh.pop %v309
        %v311 = vmul.f32 %v310, 0.5
        %v312 = vadd.f32 %v311, 0.5
        %s313 = scalar_lea.vmem %s230, 6 [#allocation9]
        %314 = vst [vmem:[%s313] sm:$0x3] %v312
        %s315 = sld [smem:[#allocation2 + $0xc]]
        %v316 = vstv %s315
        %v317 = vmul.f32 %v231, %v316
        %s318 = sld [smem:[#allocation7 + $0x4]]
        %v319 = vstv %s318
        %v320 = vadd.f32 %v317, %v319
        %s321 = sld [smem:[#allocation2 + $0xd]]
        %v322 = vstv %s321
        %v323 = vmul.f32 %v233, %v322
        %v324 = vadd.f32 %v320, %v323
        %s325 = sld [smem:[#allocation2 + $0xe]]
        %v326 = vstv %s325
        %v327 = vmul.f32 %v235, %v326
        %v328 = vadd.f32 %v324, %v327
        %v329 = vmul.f32 %v328, 0.5
        %v330 = vtanh.pop %v329
        %v331 = vmul.f32 %v330, 0.5
        %v332 = vadd.f32 %v331, 0.5
        %s333 = scalar_lea.vmem %s230, 8 [#allocation9]
        %334 = vst [vmem:[%s333] sm:$0x3] %v332
        %s335 = sand.u32 %s114, 1
        %s336 = scalar_lea.sflag [#allocation4], %s335
        %s337 = sand.u32 %s114, 1
        %s338 = smul.addr %s337, 10
        %s339 = scalar_lea.vmem [#allocation9], %s338
        // Predicated region
        $region45: #{tpu_custom_call.1} parent=31 // pred_check
          %p340 = pneg %p124
        $region46: #{tpu_custom_call.1} parent=31 // pred_check_branch
          %342 = sbr.rel (%p340) target = $region48
        $region47: #{tpu_custom_call.1} parent=31 // pred_region
          %s344 = ssub.s32 160, 160
          %345 = vsyncadd %s336, %s344
          %s346 = smul.addr %s26, 5
          %s347 = sadd.s32 %s27, %s346
          %s348 = smul.addr %s347, 32
          %s349 = scalar_lea.hbm %s3, %s348
          %s350 = sshll.u32 %s339, 4
          %s351 = int_to_ptr.vmem [resolvable:$true] %s350
          %356 = dma.vmem_to_hbm [thread:$0]  %s351, 160, %s349, %s336, 32, 32, 2
        $region48: #{tpu_custom_call.1} parent=31 // pred_fallthru
          _
      $region32: #{tpu_custom_call.1} parent=5 // pred_fallthru
        _
      %p357 = scmp.le.s32.totalorder 2, %s17
      // Predicated region
      $region49: #{tpu_custom_call.1} parent=5 // pred_check
        %p358 = pneg %p357
      $region50: #{tpu_custom_call.1} parent=5 // pred_check_branch
        %360 = sbr.rel (%p358) target = $region52
      $region51: #{tpu_custom_call.1} parent=5 // pred_region
        %s361 = ssub.s32 %s17, 2
        // Predicated region
        $region53: #{tpu_custom_call.1} parent=51 // pred_check
          %p362 = pneg %p130
        $region54: #{tpu_custom_call.1} parent=51 // pred_check_branch
          %364 = sbr.rel (%p362) target = $region56
        $region55: #{tpu_custom_call.1} parent=51 // pred_region
          %s365 = sand.u32 %s115, 1
          %s366 = scalar_lea.sflag [#allocation4], %s365
          %s367 = sand.u32 %s115, 1
          %s368 = smul.addr %s367, 10
          %s369 = scalar_lea.vmem [#allocation9], %s368
          %370 = dma.done %s366, 160
        $region56: #{tpu_custom_call.1} parent=51 // pred_fallthru
          _
      $region52: #{tpu_custom_call.1} parent=5 // pred_fallthru
        _
    $region6: #{tpu_custom_call.1} parent=1 // loop_footer
      %s21 = sadd.s32 1, %s17
    $region7: #{tpu_custom_call.1} parent=1 // loop_footer_branch
      %16 = sbr.rel target = $region3
    $region8: #{tpu_custom_call.1} parent=1 // loop_exit
      _
    %371 = vsyncpa [#allocation3], 1
    %s372 = scalar_lea.sflag [#allocation3], 1
    %373 = vsyncpa %s372, 1
    %374 = vsyncpa [#allocation4], 1
    %s375 = scalar_lea.sflag [#allocation4], 1
    %376 = vsyncpa %s375, 1
    %377 = vsyncpa [#allocation5], 1
    %s378 = scalar_lea.sflag [#allocation5], 1
    %379 = vsyncpa %s378, 1
    %380 = vsyncpa [#allocation6], 1
    %s381 = scalar_lea.sflag [#allocation6], 1
    %382 = vsyncpa %s381, 1

</llo_original>
